<compile_context>
chip_gen: v5e
topology: v5e:2x2
jax: 0.10.0
libtpu: 0.0.40
codegen_flags: <defaults>
</compile_context>

<pallas_src>
import functools

import jax
import jax.numpy as jnp
from jax.experimental import pallas as pl
from jax.experimental.pallas import tpu as pltpu


_EPS = 1e-8
_LANE = 128
_SUBLANE = 8
_STEP_VMEM_BUDGET = 24 << 20     # per-step working set target (v7x: 64 MiB/TC)
_VMEM_LIMIT_CAP = 48 << 20       # never request more scoped VMEM than this
_INTERMEDIATE_PLANES = 20        # estimate of live (TB, HWp) elementwise temps


def _round_up(x, m):
    return -(-x // m) * m


def _default_compute_dtype():
    """bf16 on v6e / v7x (bf16-native VPU/EUP); f32 elsewhere (v5e and older
    have no bf16 vector datapath, so bf16 would only add convert ops)."""
    try:
        kind = jax.devices()[0].device_kind.lower()
    except Exception:
        return jnp.float32
    if "v6" in kind or "v7" in kind:
        return jnp.bfloat16
    return jnp.float32


# ----------------------------- in-kernel math --------------------------------

def _approx_recip(x):
    """EUP approximate reciprocal of (x + eps).  Computed in f32 (the f32 EUP
    path exists on every generation) and cast back to the compute dtype."""
    r = pl.reciprocal(x.astype(jnp.float32) + _EPS, approx=True)
    return r.astype(x.dtype)


def _rgb2hsv6(r, g, b):
    """rgb2hsv() with hue kept in 'sextant' units (reference hue*6 before the
    /6).  The reference's mod-6 on the r-branch is dropped: the later mod-1
    (here mod-6) wrap after the hue shift makes it redundant.  The masked
    assignment override order (r-case, g-case, b-case, Cmax==0) is preserved."""
    cmax = jnp.maximum(jnp.maximum(r, g), b)
    cmin = jnp.minimum(jnp.minimum(r, g), b)
    delta = cmax - cmin
    inv_delta = _approx_recip(delta)
    h6 = jnp.where(cmax == r, (g - b) * inv_delta, 0.0)
    h6 = jnp.where(cmax == g, (b - r) * inv_delta + 2.0, h6)
    h6 = jnp.where(cmax == b, (r - g) * inv_delta + 4.0, h6)
    h6 = jnp.where(cmax == 0.0, 0.0, h6)
    sat = delta * _approx_recip(cmax)
    sat = jnp.where(cmax == 0.0, 0.0, sat)
    return h6, sat, cmax


def _hsv2rgb6(h6, s, v):
    """hsv2rgb() with h6 in [0,6), s,v in [0,1] guaranteed by the caller (so
    the reference's entry/exit clamps are no-ops).  The 6-sector select
    cascade is replaced by the equivalent continuous arithmetic form
        chan_n = v - c * clip(min(k, 4-k), 0, 1),  k = (n + h6) mod 6."""
    c = v * s

    def chan(n):
        k = n + h6                               # in [n, n+6)
        k = jnp.where(k >= 6.0, k - 6.0, k)      # mod 6
        t = jnp.clip(jnp.minimum(k, 4.0 - k), 0.0, 1.0)
        return v - c * t

    return chan(5.0), chan(3.0), chan(1.0)


def _hsv_chain(r, g, b, bfac, hfac, sfac):
    """rgb2hsv -> adjust_brightness -> adjust_hue -> adjust_saturate -> hsv2rgb.
    Redundant whole-HSV clamps from the reference are dropped (h stays wrapped
    and s, v are clamped exactly where they are modified)."""
    h6, s, v = _rgb2hsv6(r, g, b)
    v = jnp.clip(v * bfac, 0.0, 1.0)                 # adjust_brightness
    h6 = h6 + hfac * (255.0 * 6.0 / 360.0)           # adjust_hue (sextant units)
    h6 = h6 - 6.0 * jnp.floor(h6 * (1.0 / 6.0))      # ... % 6  (== reference % 1)
    s = jnp.clip(s * sfac, 0.0, 1.0)                 # adjust_saturate
    return _hsv2rgb6(h6, s, v)


def _contrast(r, g, b, cfac, inv_hw):
    """adjust_contrast: per-image, per-channel mean over (H, W).  The sum is
    accumulated in f32 (required for the bf16 path) and scaled by 1/(H*W) of
    the *unpadded* pixel count; padded lanes are zero (and stay zero through
    the HSV chain), so the sum is exact."""
    def adj(ch):
        m = jnp.sum(ch.astype(jnp.float32), axis=-1, keepdims=True) * inv_hw
        m = m.astype(ch.dtype)
        return jnp.clip((ch - m) * cfac + m, 0.0, 1.0)
    return adj(r), adj(g), adj(b)


# ------------------------------- Pallas kernel --------------------------------

def _color_jitter_kernel(x_ref, fac_ref, o_ref, *, rgb_first, inv_hw, hwp,
                         compute_dtype):
    # x_ref/o_ref: (TB, 3*HWp) with channels as 128-aligned lane segments.
    # fac_ref: (TB, 4) = [brightness, hue, saturation, contrast] per image.
    facs = fac_ref[...].astype(compute_dtype)
    bfac = facs[:, 0:1]
    hfac = facs[:, 1:2]
    sfac = facs[:, 2:3]
    cfac = facs[:, 3:4]

    r = x_ref[:, 0 * hwp:1 * hwp].astype(compute_dtype)   # dense (TB, HWp) planes
    g = x_ref[:, 1 * hwp:2 * hwp].astype(compute_dtype)
    b = x_ref[:, 2 * hwp:3 * hwp].astype(compute_dtype)

    if rgb_first:               # static Python bool -> single compiled path
        r, g, b = _contrast(r, g, b, cfac, inv_hw)
        r, g, b = _hsv_chain(r, g, b, bfac, hfac, sfac)
    else:
        r, g, b = _hsv_chain(r, g, b, bfac, hfac, sfac)
        r, g, b = _contrast(r, g, b, cfac, inv_hw)

    o_ref[:, 0 * hwp:1 * hwp] = r.astype(o_ref.dtype)
    o_ref[:, 1 * hwp:2 * hwp] = g.astype(o_ref.dtype)
    o_ref[:, 2 * hwp:3 * hwp] = b.astype(o_ref.dtype)


# ------------------------------- wrapper ---------------------------------------

def _step_vmem_bytes(tb, hw_padded, compute_itemsize):
    rb = _round_up(tb, _SUBLANE)
    img_block = rb * 3 * hw_padded * 4            # one f32 I/O block (in or out)
    fac_block = rb * _LANE * 4                    # (tb, 4) pads to (rb, 128)
    io = 2 * (2 * img_block + fac_block)          # double-buffered in + out + factors
    intermediates = _INTERMEDIATE_PLANES * rb * hw_padded * compute_itemsize
    return io + intermediates


def _pick_images_per_step(n, hw_padded, compute_itemsize):
    """Images per grid step.  tb is either the full (tiny) batch or a multiple
    of 8 so the (tb, *) BlockSpecs obey (8, 128) tiling; for N > 8 we
    guarantee >= 2 grid steps so v7x's two TensorCores both get work."""
    if n <= _SUBLANE:
        return n
    n8 = -(-n // _SUBLANE)
    target_steps = min(8, max(2, n8))
    tb = _SUBLANE * max(1, n8 // target_steps)
    while tb > _SUBLANE and _step_vmem_bytes(tb, hw_padded, compute_itemsize) > _STEP_VMEM_BUDGET:
        tb -= _SUBLANE
    # TODO(synk): frames large enough that even tb=8 exceeds the budget need
    # lane-axis (HW) grid tiling with a two-pass contrast mean.
    return tb


def color_jitter_pallas(x, brightness_f, hue_f, saturation_f, contrast_f, *,
                        rgb_first, compute_dtype=None):
    """x: (N, 3, H, W) f32 RGB in [0,1]; factors: (N,) f32 per-image factors."""
    N, C, H, W = x.shape
    assert C == 3
    if compute_dtype is None:
        compute_dtype = _default_compute_dtype()
    hw = H * W
    hwp = _round_up(hw, _LANE)
    itemsize = jnp.dtype(compute_dtype).itemsize
    tb = _pick_images_per_step(N, hwp, itemsize)
    n_padded = _round_up(N, tb)

    xf = x.reshape(N, C, hw)
    if hwp != hw:
        # zero lane padding: zero pixels stay zero through the jitter chain
        # (contrast runs either on the raw zeros or on HSV-chain output that
        # maps zeros to zeros), so the per-image channel sums stay exact.
        xf = jnp.pad(xf, ((0, 0), (0, 0), (0, hwp - hw)))
    if n_padded != N:
        xf = jnp.pad(xf, ((0, n_padded - N), (0, 0), (0, 0)))
    xf = xf.reshape(n_padded, C * hwp)   # free reshape: channels -> lane segments

    fac = jnp.stack([brightness_f, hue_f, saturation_f, contrast_f],
                    axis=1).astype(jnp.float32)
    if n_padded != N:
        fac = jnp.pad(fac, ((0, n_padded - N), (0, 0)), constant_values=1.0)

    kernel = functools.partial(_color_jitter_kernel,
                               rgb_first=bool(rgb_first),
                               inv_hw=1.0 / float(hw),
                               hwp=hwp,
                               compute_dtype=compute_dtype)

    img_spec = pl.BlockSpec((tb, C * hwp), lambda i: (i, 0))
    fac_spec = pl.BlockSpec((tb, 4), lambda i: (i, 0))
    vmem_limit = int(min(_VMEM_LIMIT_CAP,
                         max(32 << 20,
                             _step_vmem_bytes(tb, hwp, itemsize) + (8 << 20))))

    out = pl.pallas_call(
        kernel,
        out_shape=jax.ShapeDtypeStruct((n_padded, C * hwp), x.dtype),
        grid=(n_padded // tb,),
        in_specs=[img_spec, fac_spec],
        out_specs=img_spec,
        compiler_params=pltpu.CompilerParams(
            dimension_semantics=("parallel",),
            vmem_limit_bytes=vmem_limit),
    )(xf, fac)
    # TODO(synk): if callers can donate x, add input_output_aliases={0: 0} to
    # write the jitter in place and halve HBM output traffic.

    return out.reshape(n_padded, C, hwp)[:N, :, :hw].reshape(N, C, H, W)


# -------------------------- pure-JAX reference (sanity) ------------------------

def _reference(x, bf, hf, sf, cf, rgb_first, eps=1e-8):
    def rgb2hsv_ref(rgb):
        r, g, b = (rgb[:, 0], rgb[:, 1], rgb[:, 2])
        cmax = jnp.max(rgb, axis=1)
        cmin = jnp.min(rgb, axis=1)
        delta = cmax - cmin
        hue = jnp.where(cmax == r, jnp.mod((g - b) / (delta + eps), 6.0), 0.0)
        hue = jnp.where(cmax == g, (b - r) / (delta + eps) + 2.0, hue)
        hue = jnp.where(cmax == b, (r - g) / (delta + eps) + 4.0, hue)
        hue = jnp.where(cmax == 0.0, 0.0, hue) / 6.0
        sat = jnp.where(cmax == 0.0, 0.0, delta / (cmax + eps))
        return jnp.stack([hue, sat, cmax], axis=1)

    def hsv2rgb_ref(hsv):
        hsv = jnp.clip(hsv, 0.0, 1.0)
        hue = hsv[:, 0] * 360.0
        s, v = hsv[:, 1], hsv[:, 2]
        c = v * s
        xx = -c * (jnp.abs(jnp.mod(hue / 60.0, 2.0) - 1.0) - 1.0)
        m = v - c
        z = jnp.zeros_like(c)
        sec = [(hue >= lo) & (hue < lo + 60.0)
               for lo in (0.0, 60.0, 120.0, 180.0, 240.0, 300.0)]
        rp = jnp.select(sec, [c, xx, z, z, xx, c], z)
        gp = jnp.select(sec, [xx, c, c, xx, z, z], z)
        bp = jnp.select(sec, [z, z, xx, c, c, xx], z)
        return jnp.clip(jnp.stack([rp + m, gp + m, bp + m], axis=1), 0.0, 1.0)

    def bright(hsv):
        v = jnp.clip(hsv[:, 2] * bf[:, None, None], 0.0, 1.0)
        return jnp.clip(hsv.at[:, 2].set(v), 0.0, 1.0)

    def huef(hsv):
        h = jnp.mod(hsv[:, 0] + hf[:, None, None] * 255.0 / 360.0, 1.0)
        return hsv.at[:, 0].set(h)

    def satf(hsv):
        s = jnp.clip(hsv[:, 1] * sf[:, None, None], 0.0, 1.0)
        return jnp.clip(hsv.at[:, 1].set(s), 0.0, 1.0)

    def contrast(rgb):
        m = jnp.mean(rgb, axis=(2, 3), keepdims=True)
        return jnp.clip((rgb - m) * cf[:, None, None, None] + m, 0.0, 1.0)

    def hsv_chain(t):
        return hsv2rgb_ref(satf(huef(bright(rgb2hsv_ref(t)))))

    return hsv_chain(contrast(x)) if rgb_first else contrast(hsv_chain(x))


# ----------------------------------- main --------------------------------------

if __name__ == "__main__":
    # ColorJitter(brightness=0.4, contrast=0.4, saturation=0.4, hue=0.1,
    #             batch_size=2, stack_size=3) -> _check_input ranges:
    brightness_rng = (0.6, 1.4)
    contrast_rng = (0.6, 1.4)
    saturation_rng = (0.6, 1.4)
    hue_rng = (-0.1, 0.1)
    batch_size, stack_size = 2, 3
    H, W = 16, 16
    N = batch_size * stack_size

    key = jax.random.PRNGKey(0)
    kx, kb, kh, ks, kc, kcoin = jax.random.split(key, 6)

    x = jax.random.uniform(kx, (N, 3, H, W), dtype=jnp.float32)

    def draw(k, rng):
        f = jax.random.uniform(k, (batch_size,), dtype=jnp.float32,
                               minval=rng[0], maxval=rng[1])
        # factor.reshape(-1,1).repeat(1, stack_size).reshape(-1)
        return jnp.repeat(f, stack_size)

    bf = draw(kb, brightness_rng)
    hf = draw(kh, hue_rng)
    sf = draw(ks, saturation_rng)
    cf = draw(kc, contrast_rng)

    # ColorJitter.transform coin flip (random.uniform(0,1) >= 0.5), made
    # deterministic via the JAX PRNG.  Static Python bool -> picks the path.
    rgb_first = bool(jax.random.uniform(kcoin) >= 0.5)

    cdtype = _default_compute_dtype()
    out = color_jitter_pallas(x, bf, hf, sf, cf, rgb_first=rgb_first,
                              compute_dtype=cdtype)
    jax.block_until_ready(out)
    assert out.shape == x.shape and out.dtype == x.dtype
    assert bool(jnp.isfinite(out).all())

    # Sanity check vs a straight port of the PyTorch math.  The kernel uses
    # approx reciprocals / the arithmetic sector form (not bit-exact), and on
    # v6e/v7x the per-pixel chain runs in bf16, so the tolerance is widened
    # accordingly; gross bugs (wrong channel/sector/order) give errors ~0.3-1.
    ref = _reference(x, bf, hf, sf, cf, rgb_first)
    max_err = float(jnp.max(jnp.abs(out - ref)))
    tol = 5e-2 if cdtype == jnp.float32 else 1e-1
    assert max_err < tol, f"mismatch vs reference: {max_err} (tol {tol})"

    print("KERNEL_OK")
</pallas_src>

<mosaic_0001>
module attributes {stable_mosaic.version = 11 : i64} {
  func.func @_color_jitter_kernel(%arg0: i32, %arg1: memref<6x768xf32, #tpu.memory_space<vmem>>, %arg2: memref<6x4xf32, #tpu.memory_space<vmem>>, %arg3: memref<6x768xf32, #tpu.memory_space<vmem>>) attributes {dimension_semantics = [#tpu.dimension_semantics<parallel>], iteration_bounds = array<i64: 1>, scalar_prefetch = 0 : i64, scratch_operands = 0 : i64, tpu.core_type = #tpu.core_type<tc>, window_params = [{transform_indices = @transform_0, window_bounds = array<i64: 6, 768>}, {transform_indices = @transform_1, window_bounds = array<i64: 6, 4>}, {transform_indices = @transform_2, window_bounds = array<i64: 6, 768>}]} {
    %c0 = arith.constant 0 : index
    %c0_0 = arith.constant 0 : index
    %0 = vector.load %arg2[%c0, %c0_0] : memref<6x4xf32, #tpu.memory_space<vmem>>, vector<6x4xf32>
    %1 = vector.extract_strided_slice %0 {offsets = [0, 0], sizes = [6, 1], strides = [1, 1]} : vector<6x4xf32> to vector<6x1xf32>
    %2 = vector.extract_strided_slice %0 {offsets = [0, 1], sizes = [6, 1], strides = [1, 1]} : vector<6x4xf32> to vector<6x1xf32>
    %3 = vector.extract_strided_slice %0 {offsets = [0, 2], sizes = [6, 1], strides = [1, 1]} : vector<6x4xf32> to vector<6x1xf32>
    %4 = vector.extract_strided_slice %0 {offsets = [0, 3], sizes = [6, 1], strides = [1, 1]} : vector<6x4xf32> to vector<6x1xf32>
    %c0_1 = arith.constant 0 : index
    %c0_2 = arith.constant 0 : index
    %5 = vector.load %arg1[%c0_1, %c0_2] : memref<6x768xf32, #tpu.memory_space<vmem>>, vector<6x256xf32>
    %c0_3 = arith.constant 0 : index
    %c256 = arith.constant 256 : index
    %6 = vector.load %arg1[%c0_3, %c256] : memref<6x768xf32, #tpu.memory_space<vmem>>, vector<6x256xf32>
    %c0_4 = arith.constant 0 : index
    %c512 = arith.constant 512 : index
    %7 = vector.load %arg1[%c0_4, %c512] : memref<6x768xf32, #tpu.memory_space<vmem>>, vector<6x256xf32>
    %cst = arith.constant dense<0.000000e+00> : vector<6xf32>
    %8 = vector.multi_reduction <add>, %5, %cst [1] : vector<6x256xf32> to vector<6xf32>
    %9 = vector.shape_cast %8 : vector<6xf32> to vector<6x1xf32>
    %cst_5 = arith.constant 3.906250e-03 : f32
    %10 = vector.broadcast %cst_5 : f32 to vector<6x1xf32>
    %11 = arith.mulf %9, %10 : vector<6x1xf32>
    %12 = vector.broadcast %11 : vector<6x1xf32> to vector<6x256xf32>
    %13 = arith.subf %5, %12 : vector<6x256xf32>
    %14 = vector.broadcast %4 : vector<6x1xf32> to vector<6x256xf32>
    %15 = arith.mulf %13, %14 : vector<6x256xf32>
    %16 = vector.broadcast %11 : vector<6x1xf32> to vector<6x256xf32>
    %17 = arith.addf %15, %16 : vector<6x256xf32>
    %cst_6 = arith.constant 0.000000e+00 : f32
    %cst_7 = arith.constant 1.000000e+00 : f32
    %18 = vector.broadcast %cst_6 : f32 to vector<6x256xf32>
    %19 = arith.maximumf %18, %17 : vector<6x256xf32>
    %20 = vector.broadcast %cst_7 : f32 to vector<6x256xf32>
    %21 = arith.minimumf %20, %19 : vector<6x256xf32>
    %cst_8 = arith.constant dense<0.000000e+00> : vector<6xf32>
    %22 = vector.multi_reduction <add>, %6, %cst_8 [1] : vector<6x256xf32> to vector<6xf32>
    %23 = vector.shape_cast %22 : vector<6xf32> to vector<6x1xf32>
    %cst_9 = arith.constant 3.906250e-03 : f32
    %24 = vector.broadcast %cst_9 : f32 to vector<6x1xf32>
    %25 = arith.mulf %23, %24 : vector<6x1xf32>
    %26 = vector.broadcast %25 : vector<6x1xf32> to vector<6x256xf32>
    %27 = arith.subf %6, %26 : vector<6x256xf32>
    %28 = vector.broadcast %4 : vector<6x1xf32> to vector<6x256xf32>
    %29 = arith.mulf %27, %28 : vector<6x256xf32>
    %30 = vector.broadcast %25 : vector<6x1xf32> to vector<6x256xf32>
    %31 = arith.addf %29, %30 : vector<6x256xf32>
    %cst_10 = arith.constant 0.000000e+00 : f32
    %cst_11 = arith.constant 1.000000e+00 : f32
    %32 = vector.broadcast %cst_10 : f32 to vector<6x256xf32>
    %33 = arith.maximumf %32, %31 : vector<6x256xf32>
    %34 = vector.broadcast %cst_11 : f32 to vector<6x256xf32>
    %35 = arith.minimumf %34, %33 : vector<6x256xf32>
    %cst_12 = arith.constant dense<0.000000e+00> : vector<6xf32>
    %36 = vector.multi_reduction <add>, %7, %cst_12 [1] : vector<6x256xf32> to vector<6xf32>
    %37 = vector.shape_cast %36 : vector<6xf32> to vector<6x1xf32>
    %cst_13 = arith.constant 3.906250e-03 : f32
    %38 = vector.broadcast %cst_13 : f32 to vector<6x1xf32>
    %39 = arith.mulf %37, %38 : vector<6x1xf32>
    %40 = vector.broadcast %39 : vector<6x1xf32> to vector<6x256xf32>
    %41 = arith.subf %7, %40 : vector<6x256xf32>
    %42 = vector.broadcast %4 : vector<6x1xf32> to vector<6x256xf32>
    %43 = arith.mulf %41, %42 : vector<6x256xf32>
    %44 = vector.broadcast %39 : vector<6x1xf32> to vector<6x256xf32>
    %45 = arith.addf %43, %44 : vector<6x256xf32>
    %cst_14 = arith.constant 0.000000e+00 : f32
    %cst_15 = arith.constant 1.000000e+00 : f32
    %46 = vector.broadcast %cst_14 : f32 to vector<6x256xf32>
    %47 = arith.maximumf %46, %45 : vector<6x256xf32>
    %48 = vector.broadcast %cst_15 : f32 to vector<6x256xf32>
    %49 = arith.minimumf %48, %47 : vector<6x256xf32>
    %50 = arith.maximumf %21, %35 : vector<6x256xf32>
    %51 = arith.maximumf %50, %49 : vector<6x256xf32>
    %52 = arith.minimumf %21, %35 : vector<6x256xf32>
    %53 = arith.minimumf %52, %49 : vector<6x256xf32>
    %54 = arith.subf %51, %53 : vector<6x256xf32>
    %cst_16 = arith.constant 9.99999993E-9 : f32
    %55 = vector.broadcast %cst_16 : f32 to vector<6x256xf32>
    %56 = arith.addf %54, %55 : vector<6x256xf32>
    %57 = tpu.reciprocal %56 {approx = true} : vector<6x256xf32> -> vector<6x256xf32>
    %58 = arith.cmpf oeq, %51, %21 : vector<6x256xf32>
    %59 = arith.subf %35, %49 : vector<6x256xf32>
    %60 = arith.mulf %59, %57 : vector<6x256xf32>
    %cst_17 = arith.constant 0.000000e+00 : f32
    %61 = vector.broadcast %cst_17 : f32 to vector<6x256xf32>
    %62 = arith.select %58, %60, %61 : vector<6x256xi1>, vector<6x256xf32>
    %63 = arith.cmpf oeq, %51, %35 : vector<6x256xf32>
    %64 = arith.subf %49, %21 : vector<6x256xf32>
    %65 = arith.mulf %64, %57 : vector<6x256xf32>
    %cst_18 = arith.constant 2.000000e+00 : f32
    %66 = vector.broadcast %cst_18 : f32 to vector<6x256xf32>
    %67 = arith.addf %65, %66 : vector<6x256xf32>
    %68 = arith.select %63, %67, %62 : vector<6x256xi1>, vector<6x256xf32>
    %69 = arith.cmpf oeq, %51, %49 : vector<6x256xf32>
    %70 = arith.subf %21, %35 : vector<6x256xf32>
    %71 = arith.mulf %70, %57 : vector<6x256xf32>
    %cst_19 = arith.constant 4.000000e+00 : f32
    %72 = vector.broadcast %cst_19 : f32 to vector<6x256xf32>
    %73 = arith.addf %71, %72 : vector<6x256xf32>
    %74 = arith.select %69, %73, %68 : vector<6x256xi1>, vector<6x256xf32>
    %cst_20 = arith.constant 0.000000e+00 : f32
    %75 = vector.broadcast %cst_20 : f32 to vector<6x256xf32>
    %76 = arith.cmpf oeq, %51, %75 : vector<6x256xf32>
    %cst_21 = arith.constant 0.000000e+00 : f32
    %77 = vector.broadcast %cst_21 : f32 to vector<6x256xf32>
    %78 = arith.select %76, %77, %74 : vector<6x256xi1>, vector<6x256xf32>
    %cst_22 = arith.constant 9.99999993E-9 : f32
    %79 = vector.broadcast %cst_22 : f32 to vector<6x256xf32>
    %80 = arith.addf %51, %79 : vector<6x256xf32>
    %81 = tpu.reciprocal %80 {approx = true} : vector<6x256xf32> -> vector<6x256xf32>
    %82 = arith.mulf %54, %81 : vector<6x256xf32>
    %cst_23 = arith.constant 0.000000e+00 : f32
    %83 = vector.broadcast %cst_23 : f32 to vector<6x256xf32>
    %84 = arith.cmpf oeq, %51, %83 : vector<6x256xf32>
    %cst_24 = arith.constant 0.000000e+00 : f32
    %85 = vector.broadcast %cst_24 : f32 to vector<6x256xf32>
    %86 = arith.select %84, %85, %82 : vector<6x256xi1>, vector<6x256xf32>
    %87 = vector.broadcast %1 : vector<6x1xf32> to vector<6x256xf32>
    %88 = arith.mulf %51, %87 : vector<6x256xf32>
    %cst_25 = arith.constant 0.000000e+00 : f32
    %cst_26 = arith.constant 1.000000e+00 : f32
    %89 = vector.broadcast %cst_25 : f32 to vector<6x256xf32>
    %90 = arith.maximumf %89, %88 : vector<6x256xf32>
    %91 = vector.broadcast %cst_26 : f32 to vector<6x256xf32>
    %92 = arith.minimumf %91, %90 : vector<6x256xf32>
    %cst_27 = arith.constant 4.250000e+00 : f32
    %93 = vector.broadcast %cst_27 : f32 to vector<6x1xf32>
    %94 = arith.mulf %2, %93 : vector<6x1xf32>
    %95 = vector.broadcast %94 : vector<6x1xf32> to vector<6x256xf32>
    %96 = arith.addf %78, %95 : vector<6x256xf32>
    %cst_28 = arith.constant 0.166666672 : f32
    %97 = vector.broadcast %cst_28 : f32 to vector<6x256xf32>
    %98 = arith.mulf %96, %97 : vector<6x256xf32>
    %99 = math.floor %98 : vector<6x256xf32>
    %cst_29 = arith.constant 6.000000e+00 : f32
    %100 = vector.broadcast %cst_29 : f32 to vector<6x256xf32>
    %101 = arith.mulf %100, %99 : vector<6x256xf32>
    %102 = arith.subf %96, %101 : vector<6x256xf32>
    %103 = vector.broadcast %3 : vector<6x1xf32> to vector<6x256xf32>
    %104 = arith.mulf %86, %103 : vector<6x256xf32>
    %cst_30 = arith.constant 0.000000e+00 : f32
    %cst_31 = arith.constant 1.000000e+00 : f32
    %105 = vector.broadcast %cst_30 : f32 to vector<6x256xf32>
    %106 = arith.maximumf %105, %104 : vector<6x256xf32>
    %107 = vector.broadcast %cst_31 : f32 to vector<6x256xf32>
    %108 = arith.minimumf %107, %106 : vector<6x256xf32>
    %109 = arith.mulf %92, %108 : vector<6x256xf32>
    %cst_32 = arith.constant 5.000000e+00 : f32
    %110 = vector.broadcast %cst_32 : f32 to vector<6x256xf32>
    %111 = arith.addf %110, %102 : vector<6x256xf32>
    %cst_33 = arith.constant 6.000000e+00 : f32
    %112 = vector.broadcast %cst_33 : f32 to vector<6x256xf32>
    %113 = arith.cmpf oge, %111, %112 : vector<6x256xf32>
    %cst_34 = arith.constant 6.000000e+00 : f32
    %114 = vector.broadcast %cst_34 : f32 to vector<6x256xf32>
    %115 = arith.subf %111, %114 : vector<6x256xf32>
    %116 = arith.select %113, %115, %111 : vector<6x256xi1>, vector<6x256xf32>
    %cst_35 = arith.constant 4.000000e+00 : f32
    %117 = vector.broadcast %cst_35 : f32 to vector<6x256xf32>
    %118 = arith.subf %117, %116 : vector<6x256xf32>
    %119 = arith.minimumf %116, %118 : vector<6x256xf32>
    %cst_36 = arith.constant 0.000000e+00 : f32
    %cst_37 = arith.constant 1.000000e+00 : f32
    %120 = vector.broadcast %cst_36 : f32 to vector<6x256xf32>
    %121 = arith.maximumf %120, %119 : vector<6x256xf32>
    %122 = vector.broadcast %cst_37 : f32 to vector<6x256xf32>
    %123 = arith.minimumf %122, %121 : vector<6x256xf32>
    %124 = arith.mulf %109, %123 : vector<6x256xf32>
    %125 = arith.subf %92, %124 : vector<6x256xf32>
    %cst_38 = arith.constant 3.000000e+00 : f32
    %126 = vector.broadcast %cst_38 : f32 to vector<6x256xf32>
    %127 = arith.addf %126, %102 : vector<6x256xf32>
    %cst_39 = arith.constant 6.000000e+00 : f32
    %128 = vector.broadcast %cst_39 : f32 to vector<6x256xf32>
    %129 = arith.cmpf oge, %127, %128 : vector<6x256xf32>
    %cst_40 = arith.constant 6.000000e+00 : f32
    %130 = vector.broadcast %cst_40 : f32 to vector<6x256xf32>
    %131 = arith.subf %127, %130 : vector<6x256xf32>
    %132 = arith.select %129, %131, %127 : vector<6x256xi1>, vector<6x256xf32>
    %cst_41 = arith.constant 4.000000e+00 : f32
    %133 = vector.broadcast %cst_41 : f32 to vector<6x256xf32>
    %134 = arith.subf %133, %132 : vector<6x256xf32>
    %135 = arith.minimumf %132, %134 : vector<6x256xf32>
    %cst_42 = arith.constant 0.000000e+00 : f32
    %cst_43 = arith.constant 1.000000e+00 : f32
    %136 = vector.broadcast %cst_42 : f32 to vector<6x256xf32>
    %137 = arith.maximumf %136, %135 : vector<6x256xf32>
    %138 = vector.broadcast %cst_43 : f32 to vector<6x256xf32>
    %139 = arith.minimumf %138, %137 : vector<6x256xf32>
    %140 = arith.mulf %109, %139 : vector<6x256xf32>
    %141 = arith.subf %92, %140 : vector<6x256xf32>
    %cst_44 = arith.constant 1.000000e+00 : f32
    %142 = vector.broadcast %cst_44 : f32 to vector<6x256xf32>
    %143 = arith.addf %142, %102 : vector<6x256xf32>
    %cst_45 = arith.constant 6.000000e+00 : f32
    %144 = vector.broadcast %cst_45 : f32 to vector<6x256xf32>
    %145 = arith.cmpf oge, %143, %144 : vector<6x256xf32>
    %cst_46 = arith.constant 6.000000e+00 : f32
    %146 = vector.broadcast %cst_46 : f32 to vector<6x256xf32>
    %147 = arith.subf %143, %146 : vector<6x256xf32>
    %148 = arith.select %145, %147, %143 : vector<6x256xi1>, vector<6x256xf32>
    %cst_47 = arith.constant 4.000000e+00 : f32
    %149 = vector.broadcast %cst_47 : f32 to vector<6x256xf32>
    %150 = arith.subf %149, %148 : vector<6x256xf32>
    %151 = arith.minimumf %148, %150 : vector<6x256xf32>
    %cst_48 = arith.constant 0.000000e+00 : f32
    %cst_49 = arith.constant 1.000000e+00 : f32
    %152 = vector.broadcast %cst_48 : f32 to vector<6x256xf32>
    %153 = arith.maximumf %152, %151 : vector<6x256xf32>
    %154 = vector.broadcast %cst_49 : f32 to vector<6x256xf32>
    %155 = arith.minimumf %154, %153 : vector<6x256xf32>
    %156 = arith.mulf %109, %155 : vector<6x256xf32>
    %157 = arith.subf %92, %156 : vector<6x256xf32>
    %c0_50 = arith.constant 0 : index
    %c0_51 = arith.constant 0 : index
    %158 = vector.load %arg3[%c0_50, %c0_51] : memref<6x768xf32, #tpu.memory_space<vmem>>, vector<6x256xf32>
    tpu.vector_store %arg3[%c0_50, %c0_51], %125 {strides = array<i32>} : memref<6x768xf32, #tpu.memory_space<vmem>>, vector<6x256xf32>,
    %c0_52 = arith.constant 0 : index
    %c256_53 = arith.constant 256 : index
    %159 = vector.load %arg3[%c0_52, %c256_53] : memref<6x768xf32, #tpu.memory_space<vmem>>, vector<6x256xf32>
    tpu.vector_store %arg3[%c0_52, %c256_53], %141 {strides = array<i32>} : memref<6x768xf32, #tpu.memory_space<vmem>>, vector<6x256xf32>,
    %c0_54 = arith.constant 0 : index
    %c512_55 = arith.constant 512 : index
    %160 = vector.load %arg3[%c0_54, %c512_55] : memref<6x768xf32, #tpu.memory_space<vmem>>, vector<6x256xf32>
    tpu.vector_store %arg3[%c0_54, %c512_55], %157 {strides = array<i32>} : memref<6x768xf32, #tpu.memory_space<vmem>>, vector<6x256xf32>,
    return
  }
  func.func @transform_0(%arg0: i32) -> (i32, i32) {
    %c0_i32 = arith.constant 0 : i32
    %c0_i32_0 = arith.constant 0 : i32
    return %arg0, %c0_i32 : i32, i32
  }
  func.func @transform_1(%arg0: i32) -> (i32, i32) {
    %c0_i32 = arith.constant 0 : i32
    %c0_i32_0 = arith.constant 0 : i32
    return %arg0, %c0_i32 : i32, i32
  }
  func.func @transform_2(%arg0: i32) -> (i32, i32) {
    %c0_i32 = arith.constant 0 : i32
    %c0_i32_0 = arith.constant 0 : i32
    return %arg0, %c0_i32 : i32, i32
  }
}

</mosaic_0001>

<llo_original>
// kernel: tpu_custom_call.1
$region0: #{tpu_custom_call.1}
  #allocation0 [shape = 'u32[]', space=smem, size = 0x4, offset = 0x4, fixed_abs, tag = 'smem constant byte address 0x4 - core index']
  #allocation1 [shape = 'u32[72,128]{1,0:T(1,128)}', space=vmem, size = 0x9000, scoped, tag = 'internal scratch']
  %s0 = inlined_call_operand.hbm [shape: f32[6,768], index: 0, kind: input, shape index: {}]
  %s1 = inlined_call_operand.vmem [shape: f32[6,4], index: 1, kind: input, shape index: {}]
  %s2 = inlined_call_operand.hbm [shape: f32[6,768], index: 2, kind: output, shape index: {}]
  %s3 = sld [smem:[#allocation0]]
  $region22: #{tpu_custom_call.1} parent=0
    _
  %s5 = ssub.s32 1, %s3
  %s6 = scalar_select 0, %s5, %s3
  $region1: #{tpu_custom_call.1} parent=0
    #allocation2 [shape = 'u8[24576]{0}', space=vmem, size = 0x6000, scoped, tag = 'input window, operand 0, single buffered']
    #allocation3 [shape = 's32[1]{0}', space=sflag, size = 0x4, scoped, tag = 'scoped memory for tpu_custom_call.1']
    #allocation4 [shape = 's32[1]{0}', space=sflag, size = 0x4, scoped, tag = 'scoped memory for tpu_custom_call.1']
    #allocation5 [shape = 'u8[24576]{0}', space=vmem, size = 0x6000, scoped, tag = 'output window, operand 0, single buffered']
    %7 = vsyncpa [#allocation3], 0
    %8 = vsyncpa [#allocation4], 0
    // Predicated region
    $region2: #{tpu_custom_call.1} parent=1 // pred_check
      _
    $region3: #{tpu_custom_call.1} parent=1 // pred_check_branch
      %10 = sbr.rel (0) target = $region5
    $region4: #{tpu_custom_call.1} parent=1 // pred_region
      %12 = vsyncadd [#allocation3], 0
      %s14 = sshll.u32 %s0, 4
      %s15 = int_to_ptr.hbm [resolvable:$true] %s14
      %s16 = sshll.u32 [#allocation2], 4
      %s17 = int_to_ptr.vmem [resolvable:$true] %s16
      %19 = dma.hbm_to_vmem [thread:$0]  %s15, 768, %s17, [#allocation3]
    $region5: #{tpu_custom_call.1} parent=1 // pred_fallthru
      _
    // Predicated region
    $region6: #{tpu_custom_call.1} parent=1 // pred_check
      _
    $region7: #{tpu_custom_call.1} parent=1 // pred_check_branch
      %21 = sbr.rel (0) target = $region9
    $region8: #{tpu_custom_call.1} parent=1 // pred_region
      _
    $region9: #{tpu_custom_call.1} parent=1 // pred_fallthru
      _
    // Predicated region
    $region10: #{tpu_custom_call.1} parent=1 // pred_check
      _
    $region11: #{tpu_custom_call.1} parent=1 // pred_check_branch
      %23 = sbr.rel (0) target = $region13
    $region12: #{tpu_custom_call.1} parent=1 // pred_region
      %25 = dma.done [#allocation3], 768
    $region13: #{tpu_custom_call.1} parent=1 // pred_fallthru
      _
    %v26 = vld [vmem:[%s1] sm:$0x3f]
    %v27 = vld [vmem:[#allocation2] sm:$0x3f]
    %v28 = vld [vmem:[#allocation2 + $0x8] sm:$0x3f]
    %v29 = vld [vmem:[#allocation2 + $0x10] sm:$0x3f]
    %v30 = vld [vmem:[#allocation2 + $0x18] sm:$0x3f]
    %v31 = vld [vmem:[#allocation2 + $0x20] sm:$0x3f]
    %v32 = vld [vmem:[#allocation2 + $0x28] sm:$0x3f]
    %vm33 = vcmask 1045504
    %v34 = vsel %vm33, %v27, 0.0
    %v35 = vsel %vm33, %v28, 0.0
    %v36 = vadd.f32 %v34, %v35
    %37 = vadd.xlane.f32.xlu0 %v36
    %v38 = vpop.xlane.xlu0 %37
    %v39 = vmul.f32 %v38, 0.00390625
    %v40 = vsub.f32 %v27, %v39
    %v41 = vsub.f32 %v28, %v39
    %43 = vset.pattern.permute.xlu0 3
    %44 = vperm.xlu0 %43, %v26
    %v45 = vpop.permute.xlu0 %44
    %v47 = vmul.f32 %v40, %v45
    %v48 = vmul.f32 %v41, %v45
    %v49 = vadd.f32 %v47, %v39
    %v50 = vadd.f32 %v48, %v39
    %v51 = vmax.f32 %v49, 0.0
    %v52 = vmax.f32 %v50, 0.0
    %v53 = vmin.f32 %v51, 1.0
    %v54 = vmin.f32 %v52, 1.0
    %v55 = vsel %vm33, %v29, 0.0
    %v56 = vsel %vm33, %v30, 0.0
    %v57 = vadd.f32 %v55, %v56
    %58 = vadd.xlane.f32.xlu0 %v57
    %v59 = vpop.xlane.xlu0 %58
    %v60 = vmul.f32 %v59, 0.00390625
    %v61 = vsub.f32 %v29, %v60
    %v62 = vsub.f32 %v30, %v60
    %v63 = vmul.f32 %v61, %v45
    %v64 = vmul.f32 %v62, %v45
    %v65 = vadd.f32 %v63, %v60
    %v66 = vadd.f32 %v64, %v60
    %v67 = vmax.f32 %v65, 0.0
    %v68 = vmax.f32 %v66, 0.0
    %v69 = vmin.f32 %v67, 1.0
    %v70 = vmin.f32 %v68, 1.0
    %v71 = vsel %vm33, %v31, 0.0
    %v72 = vsel %vm33, %v32, 0.0
    %v73 = vadd.f32 %v71, %v72
    %74 = vadd.xlane.f32.xlu0 %v73
    %v75 = vpop.xlane.xlu0 %74
    %v76 = vmul.f32 %v75, 0.00390625
    %v77 = vsub.f32 %v31, %v76
    %v78 = vsub.f32 %v32, %v76
    %v79 = vmul.f32 %v77, %v45
    %v80 = vmul.f32 %v78, %v45
    %v81 = vadd.f32 %v79, %v76
    %v82 = vadd.f32 %v80, %v76
    %v83 = vmax.f32 %v81, 0.0
    %v84 = vmax.f32 %v82, 0.0
    %v85 = vmin.f32 %v83, 1.0
    %v86 = vmin.f32 %v84, 1.0
    %v87 = vmax.f32 %v53, %v69
    %v88 = vmax.f32 %v54, %v70
    %v89 = vmax.f32 %v87, %v85
    %v90 = vmax.f32 %v88, %v86
    %v91 = vmin.f32 %v53, %v69
    %v92 = vmin.f32 %v54, %v70
    %v93 = vmin.f32 %v91, %v85
    %v94 = vmin.f32 %v92, %v86
    %v95 = vsub.f32 %v89, %v93
    %v96 = vsub.f32 %v90, %v94
    %v97 = vadd.f32 %v95, 1e-08
    %v98 = vadd.f32 %v96, 1e-08
    %v99 = vrcp.pop %v97
    %v100 = vrcp.pop %v98
    %vm101 = vcmp.eq.f32.partialorder %v89, %v53
    %vm102 = vcmp.eq.f32.partialorder %v90, %v54
    %v103 = vsub.f32 %v69, %v85
    %v104 = vsub.f32 %v70, %v86
    %v105 = vmul.f32 %v103, %v99
    %v106 = vmul.f32 %v104, %v100
    %v107 = vsel %vm101, %v105, 0.0
    %v108 = vsel %vm102, %v106, 0.0
    %vm109 = vcmp.eq.f32.partialorder %v89, %v69
    %vm110 = vcmp.eq.f32.partialorder %v90, %v70
    %v111 = vsub.f32 %v85, %v53
    %v112 = vsub.f32 %v86, %v54
    %v113 = vmul.f32 %v111, %v99
    %v114 = vmul.f32 %v112, %v100
    %v115 = vadd.f32 %v113, 2.0
    %v116 = vadd.f32 %v114, 2.0
    %v117 = vsel %vm109, %v115, %v107
    %v118 = vsel %vm110, %v116, %v108
    %vm119 = vcmp.eq.f32.partialorder %v89, %v85
    %vm120 = vcmp.eq.f32.partialorder %v90, %v86
    %v121 = vsub.f32 %v53, %v69
    %v122 = vsub.f32 %v54, %v70
    %v123 = vmul.f32 %v121, %v99
    %v124 = vmul.f32 %v122, %v100
    %v125 = vadd.f32 %v123, 4.0
    %v126 = vadd.f32 %v124, 4.0
    %v127 = vsel %vm119, %v125, %v117
    %v128 = vsel %vm120, %v126, %v118
    %vm129 = vcmp.eq.f32.partialorder %v89, 0.0
    %vm130 = vcmp.eq.f32.partialorder %v90, 0.0
    %v131 = vsel %vm129, 0.0, %v127
    %v132 = vsel %vm130, 0.0, %v128
    %v133 = vadd.f32 %v89, 1e-08
    %v134 = vadd.f32 %v90, 1e-08
    %v135 = vrcp.pop %v133
    %v136 = vrcp.pop %v134
    %v137 = vmul.f32 %v95, %v135
    %v138 = vmul.f32 %v96, %v136
    %v139 = vsel %vm129, 0.0, %v137
    %v140 = vsel %vm130, 0.0, %v138
    %141 = vset.pattern.permute.xlu0 0
    %142 = vperm.xlu0 %141, %v26
    %v143 = vpop.permute.xlu0 %142
    %v145 = vmul.f32 %v89, %v143
    %v146 = vmul.f32 %v90, %v143
    %v147 = vmax.f32 %v145, 0.0
    %v148 = vmax.f32 %v146, 0.0
    %v149 = vmin.f32 %v147, 1.0
    %v150 = vmin.f32 %v148, 1.0
    %v151 = vmul.f32 %v26, 4.25
    %153 = vset.pattern.permute.xlu0 1
    %154 = vperm.xlu0 %153, %v151
    %v155 = vpop.permute.xlu0 %154
    %v157 = vadd.f32 %v131, %v155
    %v158 = vadd.f32 %v132, %v155
    %v159 = vmul.f32 %v157, 0.16666667
    %v160 = vmul.f32 %v158, 0.16666667
    %v161 = vfloor.f32 %v159
    %v162 = vfloor.f32 %v160
    %v163 = vmul.f32 %v161, 6.0
    %v164 = vmul.f32 %v162, 6.0
    %v165 = vsub.f32 %v157, %v163
    %v166 = vsub.f32 %v158, %v164
    %167 = vset.pattern.permute.xlu0 2
    %168 = vperm.xlu0 %167, %v26
    %v169 = vpop.permute.xlu0 %168
    %v171 = vmul.f32 %v139, %v169
    %v172 = vmul.f32 %v140, %v169
    %v173 = vmax.f32 %v171, 0.0
    %v174 = vmax.f32 %v172, 0.0
    %v175 = vmin.f32 %v173, 1.0
    %v176 = vmin.f32 %v174, 1.0
    %v177 = vmul.f32 %v149, %v175
    %v178 = vmul.f32 %v150, %v176
    %v179 = vadd.f32 %v165, 5.0
    %v180 = vadd.f32 %v166, 5.0
    %vm181 = vcmp.ge.f32.partialorder %v179, 6.0
    %vm182 = vcmp.ge.f32.partialorder %v180, 6.0
    %v183 = vsub.f32 %v179, 6.0
    %v184 = vsub.f32 %v180, 6.0
    %v185 = vsel %vm181, %v183, %v179
    %v186 = vsel %vm182, %v184, %v180
    %v187 = vsub.f32 4.0, %v185
    %v188 = vsub.f32 4.0, %v186
    %v189 = vmin.f32 %v185, %v187
    %v190 = vmin.f32 %v186, %v188
    %v191 = vmax.f32 %v189, 0.0
    %v192 = vmax.f32 %v190, 0.0
    %v193 = vmin.f32 %v191, 1.0
    %v194 = vmin.f32 %v192, 1.0
    %v195 = vmul.f32 %v177, %v193
    %v196 = vmul.f32 %v178, %v194
    %v197 = vsub.f32 %v149, %v195
    %v198 = vsub.f32 %v150, %v196
    %v199 = vadd.f32 %v165, 3.0
    %v200 = vadd.f32 %v166, 3.0
    %vm201 = vcmp.ge.f32.partialorder %v199, 6.0
    %vm202 = vcmp.ge.f32.partialorder %v200, 6.0
    %v203 = vsub.f32 %v199, 6.0
    %v204 = vsub.f32 %v200, 6.0
    %v205 = vsel %vm201, %v203, %v199
    %v206 = vsel %vm202, %v204, %v200
    %v207 = vsub.f32 4.0, %v205
    %v208 = vsub.f32 4.0, %v206
    %v209 = vmin.f32 %v205, %v207
    %v210 = vmin.f32 %v206, %v208
    %v211 = vmax.f32 %v209, 0.0
    %v212 = vmax.f32 %v210, 0.0
    %v213 = vmin.f32 %v211, 1.0
    %v214 = vmin.f32 %v212, 1.0
    %v215 = vmul.f32 %v177, %v213
    %v216 = vmul.f32 %v178, %v214
    %v217 = vsub.f32 %v149, %v215
    %v218 = vsub.f32 %v150, %v216
    %v219 = vadd.f32 %v165, 1.0
    %v220 = vadd.f32 %v166, 1.0
    %vm221 = vcmp.ge.f32.partialorder %v219, 6.0
    %vm222 = vcmp.ge.f32.partialorder %v220, 6.0
    %v223 = vsub.f32 %v219, 6.0
    %v224 = vsub.f32 %v220, 6.0
    %v225 = vsel %vm221, %v223, %v219
    %v226 = vsel %vm222, %v224, %v220
    %v227 = vsub.f32 4.0, %v225
    %v228 = vsub.f32 4.0, %v226
    %v229 = vmin.f32 %v225, %v227
    %v230 = vmin.f32 %v226, %v228
    %v231 = vmax.f32 %v229, 0.0
    %v232 = vmax.f32 %v230, 0.0
    %v233 = vmin.f32 %v231, 1.0
    %v234 = vmin.f32 %v232, 1.0
    %v235 = vmul.f32 %v177, %v233
    %v236 = vmul.f32 %v178, %v234
    %v237 = vsub.f32 %v149, %v235
    %v238 = vsub.f32 %v150, %v236
    %239 = vst [vmem:[#allocation5] sm:$0x3f] %v197
    %240 = vst [vmem:[#allocation5 + $0x8] sm:$0x3f] %v198
    %241 = vst [vmem:[#allocation5 + $0x10] sm:$0x3f] %v217
    %242 = vst [vmem:[#allocation5 + $0x18] sm:$0x3f] %v218
    %243 = vst [vmem:[#allocation5 + $0x20] sm:$0x3f] %v237
    %244 = vst [vmem:[#allocation5 + $0x28] sm:$0x3f] %v238
    // Predicated region
    $region14: #{tpu_custom_call.1} parent=1 // pred_check
      _
    $region15: #{tpu_custom_call.1} parent=1 // pred_check_branch
      %246 = sbr.rel (0) target = $region17
    $region16: #{tpu_custom_call.1} parent=1 // pred_region
      %248 = vsyncadd [#allocation4], 0
      %s250 = sshll.u32 [#allocation5], 4
      %s251 = int_to_ptr.vmem [resolvable:$true] %s250
      %s252 = sshll.u32 %s2, 4
      %s253 = int_to_ptr.hbm [resolvable:$true] %s252
      %255 = dma.vmem_to_hbm [thread:$0]  %s251, 768, %s253, [#allocation4]
    $region17: #{tpu_custom_call.1} parent=1 // pred_fallthru
      _
    // Predicated region
    $region18: #{tpu_custom_call.1} parent=1 // pred_check
      _
    $region19: #{tpu_custom_call.1} parent=1 // pred_check_branch
      %257 = sbr.rel (0) target = $region21
    $region20: #{tpu_custom_call.1} parent=1 // pred_region
      %259 = dma.done [#allocation4], 768
    $region21: #{tpu_custom_call.1} parent=1 // pred_fallthru
      _
    %260 = vsyncpa [#allocation3], 1
    %261 = vsyncpa [#allocation4], 1

</llo_original>
